<compile_context>
chip_gen: v5e
topology: v5e:2x2
jax: 0.10.0
libtpu: 0.0.40
codegen_flags: <defaults>
</compile_context>

<pallas_src>
import functools

import jax
import jax.numpy as jnp
from jax.experimental import pallas as pl
from jax.experimental.pallas import tpu as pltpu


def _lrn_kernel_shift(x_ref, o_ref, *, alpha, beta, local_size, pad):
    """Small-window path: cross-channel window via shifted adds (no MXU)."""
    x = x_ref[0].astype(jnp.float32)          # (C, T)
    sq = x * x
    C = x.shape[0]
    if local_size == 1:
        winsum = sq
    else:
        head = pad
        tail = local_size - 1 - pad
        parts = []
        if head:
            parts.append(jnp.zeros((head, sq.shape[1]), jnp.float32))
        parts.append(sq)
        if tail:
            parts.append(jnp.zeros((tail, sq.shape[1]), jnp.float32))
        sq_pad = jnp.concatenate(parts, axis=0) if len(parts) > 1 else sq
        winsum = sq_pad[0:C]
        for k in range(1, local_size):
            winsum = winsum + sq_pad[k:k + C]
    # base = alpha * (winsum / local_size) + 1, with the 1/size folded into alpha.
    base = (alpha / local_size) * winsum + 1.0     # base >= 1
    inv = jnp.exp(-beta * jnp.log(base))           # == base ** (-beta)
    o_ref[0] = (x * inv).astype(o_ref.dtype)


def _lrn_kernel_mxu(a_ref, x_ref, o_ref, *, alpha_over_n, beta):
    """Wide-window path: banded (C, C) bf16 matmul on the MXU, f32 accumulate."""
    x = x_ref[0].astype(jnp.float32)          # (C, T)
    sq = (x * x).astype(jnp.bfloat16)
    winsum = jnp.dot(a_ref[...], sq, preferred_element_type=jnp.float32)
    base = alpha_over_n * winsum + 1.0        # base >= 1
    inv = jnp.exp(-beta * jnp.log(base))
    o_ref[0] = (x * inv).astype(o_ref.dtype)


def _pick_hw_tile(hw, c, itemsize, target_bytes=2 << 20):
    """Lane count (multiple of 128) so the (C, T) block is roughly target_bytes."""
    hw128 = ((hw + 127) // 128) * 128
    target_lanes = target_bytes // max(1, c * itemsize)
    t = (target_lanes // 128) * 128
    return max(128, min(t, hw128))


def lrn_across_channels(x, local_size=1, alpha=1.0, beta=0.75):
    """Pallas LRN matching the PyTorch module with ACROSS_CHANNELS=True."""
    N, C, H, W = x.shape
    HW = H * W
    pad = int((local_size - 1.0) / 2)

    # Flattened (N, C, HW) view; no lane padding round trip.  The grid covers
    # ceil(HW / T) tiles and Pallas masks the ragged last tile's stores.
    xf = x.reshape(N, C, HW)

    itemsize = jnp.dtype(x.dtype).itemsize
    T = _pick_hw_tile(HW, C, itemsize)
    grid_hw = pl.cdiv(HW, T)
    # v7x megacore: avoid a 1x1 grid for small-batch shapes so both TCs get work.
    if N * grid_hw < 2 and HW > 128:
        T = max(128, ((HW // 2) // 128) * 128)
        grid_hw = pl.cdiv(HW, T)

    # MXU only pays off for genuinely wide windows; small windows stay on the
    # VPU shifted-add path even when C >= 128 (keeps the kernel bandwidth-bound).
    use_mxu = (local_size >= 16) and (C >= 128)

    if use_mxu:
        # 0/1 band matrix (exact in bf16); the 1/local_size scale is folded into
        # alpha inside the kernel after the f32-accumulated matmul.  Its index
        # map is constant, so it is DMA'd into VMEM only once.
        ci = jnp.arange(C)[:, None]
        cj = jnp.arange(C)[None, :]
        band = (cj >= ci - pad) & (cj <= ci - pad + local_size - 1)
        a_mat = band.astype(jnp.bfloat16)
        kernel = functools.partial(
            _lrn_kernel_mxu,
            alpha_over_n=float(alpha) / float(local_size),
            beta=float(beta))
        in_specs = [
            pl.BlockSpec((C, C), lambda n, h: (0, 0)),         # resident band matrix
            pl.BlockSpec((1, C, T), lambda n, h: (n, 0, h)),   # activation tile
        ]
        args = (a_mat, xf)
    else:
        kernel = functools.partial(
            _lrn_kernel_shift,
            alpha=float(alpha), beta=float(beta),
            local_size=int(local_size), pad=pad)
        in_specs = [pl.BlockSpec((1, C, T), lambda n, h: (n, 0, h))]
        args = (xf,)

    out = pl.pallas_call(
        kernel,
        out_shape=jax.ShapeDtypeStruct((N, C, HW), x.dtype),
        grid_spec=pltpu.PrefetchScalarGridSpec(
            num_scalar_prefetch=0,
            grid=(N, grid_hw),
            in_specs=in_specs,
            out_specs=pl.BlockSpec((1, C, T), lambda n, h: (n, 0, h)),
        ),
        compiler_params=pltpu.CompilerParams(
            dimension_semantics=("parallel", "parallel"),
            vmem_limit_bytes=32 * 1024 * 1024,
        ),
    )(*args)

    return out.reshape(N, C, H, W)


def _lrn_reference(x, local_size=1, alpha=1.0, beta=0.75):
    """Pure-JAX reference mirroring the PyTorch forward (ACROSS_CHANNELS=True)."""
    pad = int((local_size - 1.0) / 2)
    C = x.shape[1]
    sq = x * x
    sq_pad = jnp.pad(sq, ((0, 0), (pad, local_size - 1 - pad), (0, 0), (0, 0)))
    avg = sum(sq_pad[:, k:k + C] for k in range(local_size)) / local_size
    div = (avg * alpha + 1.0) ** beta
    return x / div


if __name__ == "__main__":
    key = jax.random.PRNGKey(0)

    # 1) Default module config (local_size=1, alpha=1.0, beta=0.75): elementwise.
    x = jax.random.normal(key, (2, 4, 16, 16), dtype=jnp.float32)
    out_default = jax.block_until_ready(lrn_across_channels(x))
    ref_default = _lrn_reference(x)
    assert jnp.allclose(out_default, ref_default, atol=1e-5, rtol=1e-5)

    # 2) Small cross-channel window: shifted-add path.
    out_wide = jax.block_until_ready(
        lrn_across_channels(x, local_size=3, alpha=1e-2, beta=0.75))
    ref_wide = _lrn_reference(x, local_size=3, alpha=1e-2, beta=0.75)
    assert jnp.allclose(out_wide, ref_wide, atol=1e-5, rtol=1e-5)

    # 3) Ragged spatial dim (HW=100 < 128): exercises the masked last tile.
    xr = jax.random.normal(jax.random.PRNGKey(2), (2, 8, 10, 10), dtype=jnp.float32)
    out_rag = jax.block_until_ready(
        lrn_across_channels(xr, local_size=5, alpha=1e-2, beta=0.75))
    ref_rag = _lrn_reference(xr, local_size=5, alpha=1e-2, beta=0.75)
    assert jnp.allclose(out_rag, ref_rag, atol=1e-5, rtol=1e-5)

    # 4) Wide window + C >= 128: banded-MXU (bf16) path; looser tolerance.
    xb = jax.random.normal(jax.random.PRNGKey(1), (2, 128, 8, 8), dtype=jnp.float32)
    out_mxu = jax.block_until_ready(
        lrn_across_channels(xb, local_size=17, alpha=1e-3, beta=0.75))
    ref_mxu = _lrn_reference(xb, local_size=17, alpha=1e-3, beta=0.75)
    assert jnp.allclose(out_mxu, ref_mxu, atol=1e-3, rtol=1e-3)

    print("KERNEL_OK")
</pallas_src>

<mosaic_0001>
module attributes {stable_mosaic.version = 11 : i64} {
  func.func @_lrn_kernel_shift(%arg0: i32, %arg1: i32, %arg2: memref<1x4x256xf32, #tpu.memory_space<vmem>>, %arg3: memref<1x4x256xf32, #tpu.memory_space<vmem>>) attributes {dimension_semantics = [#tpu.dimension_semantics<parallel>, #tpu.dimension_semantics<parallel>], iteration_bounds = array<i64: 2, 1>, scalar_prefetch = 0 : i64, scratch_operands = 0 : i64, tpu.core_type = #tpu.core_type<tc>, window_params = [{transform_indices = @transform_0, window_bounds = array<i64: 1, 4, 256>}, {transform_indices = @transform_1, window_bounds = array<i64: 1, 4, 256>}]} {
    %c0 = arith.constant 0 : index
    %c0_0 = arith.constant 0 : index
    %c0_1 = arith.constant 0 : index
    %0 = vector.load %arg2[%c0, %c0_0, %c0_1] : memref<1x4x256xf32, #tpu.memory_space<vmem>>, vector<1x4x256xf32>
    %1 = vector.shape_cast %0 : vector<1x4x256xf32> to vector<4x256xf32>
    %2 = arith.mulf %1, %1 : vector<4x256xf32>
    %cst = arith.constant 1.000000e+00 : f32
    %3 = vector.broadcast %cst : f32 to vector<4x256xf32>
    %4 = arith.mulf %3, %2 : vector<4x256xf32>
    %cst_2 = arith.constant 1.000000e+00 : f32
    %5 = vector.broadcast %cst_2 : f32 to vector<4x256xf32>
    %6 = arith.addf %4, %5 : vector<4x256xf32>
    %7 = math.log %6 : vector<4x256xf32>
    %cst_3 = arith.constant -7.500000e-01 : f32
    %8 = vector.broadcast %cst_3 : f32 to vector<4x256xf32>
    %9 = arith.mulf %8, %7 : vector<4x256xf32>
    %10 = math.exp %9 : vector<4x256xf32>
    %11 = arith.mulf %1, %10 : vector<4x256xf32>
    %c0_4 = arith.constant 0 : index
    %c0_5 = arith.constant 0 : index
    %c0_6 = arith.constant 0 : index
    %12 = vector.load %arg3[%c0_4, %c0_5, %c0_6] : memref<1x4x256xf32, #tpu.memory_space<vmem>>, vector<1x4x256xf32>
    %13 = vector.shape_cast %12 : vector<1x4x256xf32> to vector<4x256xf32>
    %14 = vector.shape_cast %11 : vector<4x256xf32> to vector<1x4x256xf32>
    tpu.vector_store %arg3[%c0_4, %c0_5, %c0_6], %14 {strides = array<i32>} : memref<1x4x256xf32, #tpu.memory_space<vmem>>, vector<1x4x256xf32>,
    return
  }
  func.func @transform_0(%arg0: i32, %arg1: i32) -> (i32, i32, i32) {
    %c0_i32 = arith.constant 0 : i32
    %c0_i32_0 = arith.constant 0 : i32
    return %arg0, %c0_i32, %arg1 : i32, i32, i32
  }
  func.func @transform_1(%arg0: i32, %arg1: i32) -> (i32, i32, i32) {
    %c0_i32 = arith.constant 0 : i32
    %c0_i32_0 = arith.constant 0 : i32
    return %arg0, %c0_i32, %arg1 : i32, i32, i32
  }
}

</mosaic_0001>

<llo_original>
// kernel: tpu_custom_call.1
$region0: #{tpu_custom_call.1}
  #allocation0 [shape = 'u32[]', space=smem, size = 0x4, offset = 0x4, fixed_abs, tag = 'smem constant byte address 0x4 - core index']
  #allocation1 [shape = 'u32[72,128]{1,0:T(1,128)}', space=vmem, size = 0x9000, scoped, tag = 'internal scratch']
  %s0 = inlined_call_operand.hbm [shape: f32[2,4,256], index: 0, kind: input, shape index: {}]
  %s1 = inlined_call_operand.hbm [shape: f32[2,4,256], index: 1, kind: output, shape index: {}]
  %s2 = sld [smem:[#allocation0]]
  $region41: #{tpu_custom_call.1} parent=0
    _
  %s4 = ssub.s32 1, %s2
  %s5 = scalar_select 0, %s4, %s2
  $region1: #{tpu_custom_call.1} parent=0
    #allocation2 [shape = 'u8[8192]{0}', space=vmem, size = 0x2000, scoped, tag = 'input window, operand 0']
    #allocation3 [shape = 's32[2]{0}', space=sflag, size = 0x8, scoped, tag = 'scoped memory for tpu_custom_call.1']
    #allocation4 [shape = 's32[2]{0}', space=sflag, size = 0x8, scoped, tag = 'scoped memory for tpu_custom_call.1']
    #allocation5 [shape = 'u8[8192]{0}', space=vmem, size = 0x2000, scoped, tag = 'output window, operand 0']
    %6 = vsyncpa [#allocation3], 0
    %s7 = scalar_lea.sflag [#allocation3], 1
    %8 = vsyncpa %s7, 0
    %9 = vsyncpa [#allocation4], 0
    %s10 = scalar_lea.sflag [#allocation4], 1
    %11 = vsyncpa %s10, 0
    loop: start=0, step=1, limit=4
    $region2: #{tpu_custom_call.1} parent=1 // loop_pre_header
      _
    $region3: #{tpu_custom_call.1} parent=1 // loop_header
      %s13 = sphi 0, %s17
      %p14 = scmp.ge.s32.totalorder %s13, 4
      %s20 = sphi 0, %s32
      %s21 = sphi 0, %s28
      %s22 = sphi 0, %s20
      %s23 = sphi 0, %s21
      %s24 = sphi 0, %s22
      %s25 = sphi 0, %s23
      %s37 = sphi 0, %s39
      %s40 = sphi 0, %s37
      %s41 = sphi 0, %s40
      %s57 = sphi 0, %s41
      %s65 = sphi 0, %s67
      %s68 = sphi 0, %s65
      %s69 = sphi 0, %s68
      %s85 = sphi 0, %s69
    $region4: #{tpu_custom_call.1} parent=1 // loop_header_branch
      %16 = sbr.rel (%p14) target = $region8
    $region5: #{tpu_custom_call.1} parent=1 // loop_body
      %s18 = ssub.s32 %s13, 1
      %s19 = ssub.s32 %s13, 2
      %s26 = sadd.s32 1, %s21
      %p27 = scmp.ge.s32.totalorder %s26, 1
      %s28 = scalar_select %p27, 0, %s26
      %s29 = sadd.s32 1, %s20
      %s30 = scalar_select %p27, %s29, %s20
      %p31 = scmp.ge.s32.totalorder %s30, 2
      %s32 = scalar_select %p31, 0, %s30
      %s33 = ssub.s32 %s20, %s32
      %s34 = ssub.s32 %s21, %s28
      %s35 = sor.u32 %s33, %s34
      %p36 = scmp.eq.s32.totalorder %s35, 0
      %s38 = sadd.s32 %s37, 1
      %s39 = scalar_select %p36, %s37, %s38
      %p42 = pneg %p36
      %p43 = scmp.eq.s32.totalorder %s13, 1
      %p44 = por %p42, %p43
      %p45 = scmp.ne.s32.totalorder %s37, %s40
      %p46 = scmp.eq.s32.totalorder %s13, 0
      %p47 = por %p45, %p46
      %p48 = scmp.ne.s32.totalorder %s37, %s40
      %p49 = scmp.eq.s32.totalorder %s18, 1
      %p50 = por %p48, %p49
      %p51 = scmp.ne.s32.totalorder %s40, %s41
      %p52 = scmp.eq.s32.totalorder %s18, 0
      %p53 = por %p51, %p52
      %p54 = scmp.ne.s32.totalorder %s40, %s41
      %p55 = scmp.eq.s32.totalorder %s19, 1
      %p56 = por %p54, %p55
      %p58 = scmp.ne.s32.totalorder %s41, %s57
      %p59 = scmp.eq.s32.totalorder %s19, 0
      %p60 = por %p58, %p59
      %s61 = ssub.s32 %s20, %s32
      %s62 = ssub.s32 %s21, %s28
      %s63 = sor.u32 %s61, %s62
      %p64 = scmp.eq.s32.totalorder %s63, 0
      %s66 = sadd.s32 %s65, 1
      %s67 = scalar_select %p64, %s65, %s66
      %p70 = pneg %p64
      %p71 = scmp.eq.s32.totalorder %s13, 1
      %p72 = por %p70, %p71
      %p73 = scmp.ne.s32.totalorder %s65, %s68
      %p74 = scmp.eq.s32.totalorder %s13, 0
      %p75 = por %p73, %p74
      %p76 = scmp.ne.s32.totalorder %s65, %s68
      %p77 = scmp.eq.s32.totalorder %s18, 1
      %p78 = por %p76, %p77
      %p79 = scmp.ne.s32.totalorder %s68, %s69
      %p80 = scmp.eq.s32.totalorder %s18, 0
      %p81 = por %p79, %p80
      %p82 = scmp.ne.s32.totalorder %s68, %s69
      %p83 = scmp.eq.s32.totalorder %s19, 1
      %p84 = por %p82, %p83
      %p86 = scmp.ne.s32.totalorder %s69, %s85
      %p87 = scmp.eq.s32.totalorder %s19, 0
      %p88 = por %p86, %p87
      %p89 = scmp.le.s32.totalorder 1, %s13
      %p90 = scmp.lt.s32.totalorder %s13, 3
      %p91 = pnand %p89, %p90
      %p92 = pneg %p91
      // Predicated region
      $region9: #{tpu_custom_call.1} parent=5 // pred_check
        _
      $region10: #{tpu_custom_call.1} parent=5 // pred_check_branch
        %94 = sbr.rel (%p91) target = $region12
      $region11: #{tpu_custom_call.1} parent=5 // pred_region
        %s95 = ssub.s32 %s13, 1
      $region12: #{tpu_custom_call.1} parent=5 // pred_fallthru
        _
      %p96 = scmp.lt.s32.totalorder %s13, 2
      // Predicated region
      $region13: #{tpu_custom_call.1} parent=5 // pred_check
        %p97 = pneg %p96
      $region14: #{tpu_custom_call.1} parent=5 // pred_check_branch
        %99 = sbr.rel (%p97) target = $region16
      $region15: #{tpu_custom_call.1} parent=5 // pred_region
        // Predicated region
        $region17: #{tpu_custom_call.1} parent=15 // pred_check
          %p100 = pneg %p47
        $region18: #{tpu_custom_call.1} parent=15 // pred_check_branch
          %102 = sbr.rel (%p100) target = $region20
        $region19: #{tpu_custom_call.1} parent=15 // pred_region
          %s103 = sand.u32 %s37, 1
          %s104 = scalar_lea.sflag [#allocation3], %s103
          %s105 = sand.u32 %s37, 1
          %s106 = smul.addr %s105, 8
          %s107 = scalar_lea.vmem [#allocation2], %s106
          %s108 = smul.u32 2, %s21
          %110 = vsyncadd %s104, 0
          %s111 = smul.addr %s20, 2
          %s112 = sadd.s32 %s108, %s111
          %s113 = smul.addr %s112, 4
          %s114 = scalar_lea.hbm %s0, %s113
          %s116 = sshll.u32 %s114, 4
          %s117 = int_to_ptr.hbm [resolvable:$true] %s116
          %s118 = sshll.u32 %s107, 4
          %s119 = int_to_ptr.vmem [resolvable:$true] %s118
          %121 = dma.hbm_to_vmem [thread:$0]  %s117, 128, %s119, %s104
        $region20: #{tpu_custom_call.1} parent=15 // pred_fallthru
          _
      $region16: #{tpu_custom_call.1} parent=5 // pred_fallthru
        _
      %p122 = scmp.le.s32.totalorder 1, %s13
      %p123 = scmp.lt.s32.totalorder %s13, 3
      %p124 = pnand %p122, %p123
      %p125 = pneg %p124
      // Predicated region
      $region21: #{tpu_custom_call.1} parent=5 // pred_check
        _
      $region22: #{tpu_custom_call.1} parent=5 // pred_check_branch
        %127 = sbr.rel (%p124) target = $region24
      $region23: #{tpu_custom_call.1} parent=5 // pred_region
        %s128 = ssub.s32 %s13, 1
        %s129 = sand.u32 %s40, 1
        %s130 = scalar_lea.sflag [#allocation3], %s129
        %s131 = sand.u32 %s40, 1
        %s132 = smul.addr %s131, 8
        %s133 = scalar_lea.vmem [#allocation2], %s132
        // Predicated region
        $region25: #{tpu_custom_call.1} parent=23 // pred_check
          %p134 = pneg %p53
        $region26: #{tpu_custom_call.1} parent=23 // pred_check_branch
          %136 = sbr.rel (%p134) target = $region28
        $region27: #{tpu_custom_call.1} parent=23 // pred_region
          %138 = dma.done %s130, 128
        $region28: #{tpu_custom_call.1} parent=23 // pred_fallthru
          _
        %s139 = sand.u32 %s40, 1
        %s140 = scalar_lea.sflag [#allocation3], %s139
        %s141 = sand.u32 %s40, 1
        %s142 = smul.addr %s141, 8
        %s143 = scalar_lea.vmem [#allocation2], %s142
        %p144 = pneg %p53
        %p145 = pneg %p50
        %p146 = pneg %p81
        %p147 = pneg %p78
        %s148 = sand.u32 %s68, 1
        %s149 = scalar_lea.sflag [#allocation4], %s148
        %s150 = sand.u32 %s68, 1
        %s151 = smul.addr %s150, 8
        %s152 = scalar_lea.vmem [#allocation5], %s151
        %s153 = smul.u32 2, %s23
        %s154 = smul.u32 2, %s23
        %v155 = vld [vmem:[%s133] sm:$0xff]
        %v156 = vmul.f32 %v155, %v155
        %v157 = vadd.f32 %v156, 1.0
        %v158 = vlog2.pop %v157
        %v159 = vmul.f32 %v158, 0.6931472
        %v160 = vmul.f32 %v159, -0.75
        %v161 = vmul.f32 %v160, 1.442695
        %v162 = vpow.pop %v161
        %v163 = vmul.f32 %v155, %v162
        %164 = vst [vmem:[%s152] sm:$0xff] %v163
        %s165 = sand.u32 %s68, 1
        %s166 = scalar_lea.sflag [#allocation4], %s165
        %s167 = sand.u32 %s68, 1
        %s168 = smul.addr %s167, 8
        %s169 = scalar_lea.vmem [#allocation5], %s168
        // Predicated region
        $region29: #{tpu_custom_call.1} parent=23 // pred_check
          %p170 = pneg %p78
        $region30: #{tpu_custom_call.1} parent=23 // pred_check_branch
          %172 = sbr.rel (%p170) target = $region32
        $region31: #{tpu_custom_call.1} parent=23 // pred_region
          %s173 = smul.u32 2, %s23
          %175 = vsyncadd %s166, 0
          %s176 = smul.addr %s22, 2
          %s177 = sadd.s32 %s173, %s176
          %s178 = smul.addr %s177, 4
          %s179 = scalar_lea.hbm %s1, %s178
          %s181 = sshll.u32 %s169, 4
          %s182 = int_to_ptr.vmem [resolvable:$true] %s181
          %s183 = sshll.u32 %s179, 4
          %s184 = int_to_ptr.hbm [resolvable:$true] %s183
          %186 = dma.vmem_to_hbm [thread:$0]  %s182, 128, %s184, %s166
        $region32: #{tpu_custom_call.1} parent=23 // pred_fallthru
          _
      $region24: #{tpu_custom_call.1} parent=5 // pred_fallthru
        _
      %p187 = scmp.le.s32.totalorder 2, %s13
      // Predicated region
      $region33: #{tpu_custom_call.1} parent=5 // pred_check
        %p188 = pneg %p187
      $region34: #{tpu_custom_call.1} parent=5 // pred_check_branch
        %190 = sbr.rel (%p188) target = $region36
      $region35: #{tpu_custom_call.1} parent=5 // pred_region
        %s191 = ssub.s32 %s13, 2
        // Predicated region
        $region37: #{tpu_custom_call.1} parent=35 // pred_check
          %p192 = pneg %p84
        $region38: #{tpu_custom_call.1} parent=35 // pred_check_branch
          %194 = sbr.rel (%p192) target = $region40
        $region39: #{tpu_custom_call.1} parent=35 // pred_region
          %s195 = sand.u32 %s69, 1
          %s196 = scalar_lea.sflag [#allocation4], %s195
          %s197 = sand.u32 %s69, 1
          %s198 = smul.addr %s197, 8
          %s199 = scalar_lea.vmem [#allocation5], %s198
          %201 = dma.done %s196, 128
        $region40: #{tpu_custom_call.1} parent=35 // pred_fallthru
          _
      $region36: #{tpu_custom_call.1} parent=5 // pred_fallthru
        _
    $region6: #{tpu_custom_call.1} parent=1 // loop_footer
      %s17 = sadd.s32 1, %s13
    $region7: #{tpu_custom_call.1} parent=1 // loop_footer_branch
      %12 = sbr.rel target = $region3
    $region8: #{tpu_custom_call.1} parent=1 // loop_exit
      _
    %202 = vsyncpa [#allocation3], 1
    %s203 = scalar_lea.sflag [#allocation3], 1
    %204 = vsyncpa %s203, 1
    %205 = vsyncpa [#allocation4], 1
    %s206 = scalar_lea.sflag [#allocation4], 1
    %207 = vsyncpa %s206, 1

</llo_original>
